<compile_context>
chip_gen: v6e
topology: v6e:2x2x1
jax: 0.10.0
libtpu: 0.0.40
codegen_flags: <defaults>
</compile_context>

<pallas_src>
import jax
import jax.numpy as jnp
from jax.experimental import pallas as pl
from jax.experimental.pallas import tpu as pltpu


# --------------------------------------------------------------------------- #
# Kernel
# --------------------------------------------------------------------------- #
def make_primary_capsule_kernel(P, K, use_bf16):
    mm_dtype = jnp.bfloat16 if use_bf16 else jnp.float32

    def to_mm(a):
        return a if a.dtype == mm_dtype else a.astype(mm_dtype)

    def kernel(x_ref, l_ref, wlin_ref, blin_ref, wpack_ref, out_ref):
        # x_ref:     (TB, N, Din)               mm_dtype
        # l_ref:     (TB, N, N)                 mm_dtype
        # wlin_ref:  (Din, latent)              mm_dtype
        # blin_ref:  (1, latent)                f32
        # wpack_ref: (K+1, P*latent, PO_pad)    mm_dtype, block-diag, cols = o*P + p,
        #                                       zero-padded to a multiple of 128
        # out_ref:   (TB, N, PO_pad)            f32
        TB, N, Din = x_ref.shape
        PL = wpack_ref.shape[1]
        POp = wpack_ref.shape[2]

        # ---- fused nn.Linear: one (TB*N, Din) @ (Din, latent) MXU call ----------
        # (leading-dim merge reshape; cheap when N % 8 == 0 — see wrapper note)
        x2 = x_ref[...].reshape(TB * N, Din)
        x_lat = jnp.dot(x2, wlin_ref[...], preferred_element_type=jnp.float32)
        x_lat = x_lat + blin_ref[...]                          # (TB*N, latent) f32

        # ---- incremental moments, stacked along the lane dimension --------------
        moms = [x_lat]
        m = x_lat
        for _ in range(P - 1):
            m = m * x_lat                                      # O(P) VPU multiplies
            moms.append(m)
        y2 = jnp.concatenate(moms, axis=-1)                    # (TB*N, PL) f32

        wpack = [wpack_ref[k] for k in range(K + 1)]           # hoisted weight loads
        l_all = l_ref[...]                                     # (TB, N, N)

        # ---- k = 0: one wide projection for the whole batch block (M = TB*N) ----
        acc = jnp.dot(to_mm(y2), wpack[0],
                      preferred_element_type=jnp.float32)      # (TB*N, PO_pad) f32

        # ---- k = 1..K: ONE batched L-apply + ONE wide projection per power ------
        # Recurrence carry y3 and accumulator acc stay f32; only the MXU inputs are
        # (optionally) bf16.  Note: in bf16 mode the carry is rounded to bf16 at
        # every MXU input, so error compounds over K — acceptable for small K and
        # well-scaled Laplacians; use the f32 path otherwise.
        y3 = y2.reshape(TB, N, PL)
        for kk in range(1, K + 1):
            y3 = jnp.einsum('bnm,bml->bnl', l_all, to_mm(y3),
                            preferred_element_type=jnp.float32)        # (TB, N, PL)
            acc = acc + jnp.dot(to_mm(y3.reshape(TB * N, PL)), wpack[kk],
                                preferred_element_type=jnp.float32)    # (TB*N, PO_pad)

        # Per-capsule ReLU (the module's trailing ReLU is redundant: relu∘relu).
        # Single lane-dense store (PO_pad is a multiple of 128) for the whole block.
        out_ref[...] = jnp.maximum(acc, 0.0).reshape(TB, N, POp)

    return kernel


# --------------------------------------------------------------------------- #
# Wrapper helpers
# --------------------------------------------------------------------------- #
def pack_gcn_weights(W_gcn, out_cols):
    """(P, K+1, latent, out) -> (K+1, P*latent, out_cols): block-diagonal over the P
    capsules with output columns already in stack(-1)+flatten order (col = o*P + p),
    zero-padded up to `out_cols` so the kernel's output store is lane-dense."""
    P, Kp1, latent, out_dim = W_gcn.shape
    W = jnp.transpose(W_gcn, (1, 0, 2, 3))                    # (K+1, P, latent, out)
    eye = jnp.eye(P, dtype=W_gcn.dtype)
    Wp = jnp.einsum('kplo,pq->kploq', W, eye)                 # (K+1, P, latent, out, P)
    Wp = Wp.reshape(Kp1, P * latent, out_dim * P)
    pad = out_cols - out_dim * P
    if pad > 0:
        Wp = jnp.pad(Wp, ((0, 0), (0, 0), (0, pad)))
    # TODO(synk): once P*out_dim exceeds the MXU tile width (128/256) the block-
    # diagonal packing wastes (P-1)/P of the projection MACs on zeros; switch to
    # per-capsule (latent, out_dim) projections batched over P in that regime.
    return Wp


def _vmem_budget_bytes():
    """Generation-aware VMEM budget: physical capacity minus compiler headroom."""
    cap = None
    try:
        cap = getattr(pltpu.get_tpu_info(), "vmem_capacity_bytes", None)
    except Exception:
        cap = None
    if not cap or cap <= 0:
        cap = 64 * 1024 * 1024          # conservative default = v7x per-core VMEM
    return int(cap * 0.85)              # ~54 MiB on v7x, ~108 MiB on v5e/v6e


def _pick_batch_block(B, footprint, budget):
    """Largest batch block that fits the VMEM budget while leaving >=2 grid steps
    (so both v7x TensorCores get work under dimension_semantics=('parallel',))."""
    candidates = [tb for tb in (16, 8, 4, 2, 1) if B % tb == 0]
    for tb in candidates:
        if B >= 2 and B // tb < 2:
            continue
        if footprint(tb) <= budget:
            return tb
    for tb in candidates:               # fallback: accept a single grid step
        if footprint(tb) <= budget:
            return tb
    # TODO(synk): if even TB=1 overflows the budget (very large N, esp. v7x's
    # 64 MiB VMEM), stream L in (tile_n, N) row blocks with an inner
    # pltpu.emit_pipeline; the (N, P*latent) recurrence carry stays resident.
    return 1


def _make_l_spec(TB, N, num_steps, budget, footprint, itemsize):
    idx = lambda b: (b, 0, 0)
    # 3-deep buffering on the dominant L stream hides its TB*N^2 DMA on v5e/v6e
    # (128 MiB VMEM). Skipped on short grids, on v7x (low budget), or when the
    # third buffer would not fit.
    if (hasattr(pl, "Buffered") and num_steps >= 3
            and budget >= 96 * 1024 * 1024
            and footprint(TB) + TB * N * N * itemsize <= budget):
        try:
            return pl.BlockSpec((TB, N, N), idx, pipeline_mode=pl.Buffered(3))
        except TypeError:
            pass
    return pl.BlockSpec((TB, N, N), idx)


# --------------------------------------------------------------------------- #
# Forward pass
# --------------------------------------------------------------------------- #
def primary_capsule_forward(X, L, W_lin, b_lin, W_gcn, *, use_bf16=False):
    """X: (B,N,Din)  L: (B,N,N)  W_lin: (Din,latent)  b_lin: (latent,)
       W_gcn: (P, K+1, latent, out_dim)   ->   (B, N, out_dim*P)"""
    B, N, Din = X.shape
    P, Kp1, latent, out_dim = W_gcn.shape
    K = Kp1 - 1
    PL = P * latent
    PO = out_dim * P
    POp = ((PO + 127) // 128) * 128          # lane-dense output width (>=128)

    mm_dtype = jnp.bfloat16 if use_bf16 else jnp.float32
    itm = jnp.dtype(mm_dtype).itemsize

    # bf16 path ships every MXU input (X, L, weights) in bf16; f32 otherwise.
    X_in = X.astype(mm_dtype)
    L_in = L.astype(mm_dtype)
    W_lin_in = W_lin.astype(mm_dtype)
    b_lin2 = b_lin.reshape(1, latent).astype(jnp.float32)
    W_pack = pack_gcn_weights(W_gcn, POp).astype(mm_dtype)

    budget = _vmem_budget_bytes()
    w_bytes = (W_lin_in.size * itm + b_lin2.size * 4 + W_pack.size * itm)

    def footprint(tb):
        rows = tb * N
        # double-buffered pipeline blocks (X, L, out)
        blocks = 2 * (rows * Din * itm + tb * N * N * itm + rows * POp * 4)
        # in-kernel intermediates (x_lat + moments, y2 + y3 carry + bf16 cast,
        # acc + per-k matmul result, loaded L value)
        interm = (rows * latent * 4 * (P + 1)
                  + rows * PL * (4 * 2 + itm)
                  + rows * POp * 4 * 2
                  + tb * N * N * itm)
        return blocks + 2 * w_bytes + interm

    TB = _pick_batch_block(B, footprint, budget)
    num_steps = B // TB
    vmem_limit = int(min(max(footprint(TB), 32 * 1024 * 1024), budget))

    # NOTE: the in-kernel (TB,N,·) <-> (TB*N,·) reshapes are leading-dim merges and
    # are only guaranteed copy-free when N % 8 == 0 (sublane tiling).
    kernel = make_primary_capsule_kernel(P, K, use_bf16)
    l_spec = _make_l_spec(TB, N, num_steps, budget, footprint, itm)

    out = pl.pallas_call(
        kernel,
        out_shape=jax.ShapeDtypeStruct((B, N, POp), jnp.float32),
        grid_spec=pltpu.PrefetchScalarGridSpec(
            num_scalar_prefetch=0,
            grid=(num_steps,),
            in_specs=[
                pl.BlockSpec((TB, N, Din), lambda b: (b, 0, 0)),
                l_spec,
                pl.BlockSpec((Din, latent), lambda b: (0, 0)),
                pl.BlockSpec((1, latent), lambda b: (0, 0)),
                pl.BlockSpec((Kp1, PL, POp), lambda b: (0, 0, 0)),
            ],
            out_specs=pl.BlockSpec((TB, N, POp), lambda b: (b, 0, 0)),
        ),
        compiler_params=pltpu.CompilerParams(
            dimension_semantics=("parallel",),
            vmem_limit_bytes=vmem_limit),
    )(X_in, L_in, W_lin_in, b_lin2, W_pack)

    # Columns already carry the stack(-1)+flatten(-2,-1) order and their ReLU;
    # only the zero padding (if any) is sliced off here.
    return out if POp == PO else out[..., :PO]


# --------------------------------------------------------------------------- #
# Pure-JAX reference (mirrors the PyTorch module)
# --------------------------------------------------------------------------- #
def reference_forward(X, L, W_lin, b_lin, W_gcn):
    P, Kp1, latent, out_dim = W_gcn.shape
    x_lat = jnp.einsum("bnd,dl->bnl", X, W_lin) + b_lin
    outs = []
    for idx in range(P):
        M = x_lat ** (idx + 1)
        y = M
        acc = jnp.einsum("bnl,lo->bno", y, W_gcn[idx, 0])
        for kk in range(1, Kp1):
            y = jnp.einsum("bnm,bml->bnl", L, y)
            acc = acc + jnp.einsum("bnl,lo->bno", y, W_gcn[idx, kk])
        outs.append(jax.nn.relu(acc))
    out = jnp.stack(outs, -1)                        # (B, N, out_dim, P)
    out = out.reshape(out.shape[0], out.shape[1], -1)
    return jax.nn.relu(out)


if __name__ == "__main__":
    # Small shapes consistent with the module
    B, N = 2, 16          # batch, num_nodes
    IN_DIM = 8            # input feature dim
    LATENT = 32           # latent_dim
    OUT_DIM = 16          # per-capsule output dim
    P, K = 3, 3           # number of moment capsules, Laplacian power order

    key = jax.random.PRNGKey(0)
    k1, k2, k3, k4, k5 = jax.random.split(key, 5)

    X = jax.random.normal(k1, (B, N, IN_DIM), dtype=jnp.float32)
    # symmetric synthetic "Laplacian" (only the (B, N, N) shape matters)
    A = jax.random.normal(k2, (B, N, N), dtype=jnp.float32) * 0.1
    L = 0.5 * (A + jnp.transpose(A, (0, 2, 1)))

    # nn.Linear(in, latent): uniform init, stored as (in, latent)
    lim_lin = 1.0 / jnp.sqrt(IN_DIM)
    W_lin = jax.random.uniform(k3, (IN_DIM, LATENT), jnp.float32, -lim_lin, lim_lin)
    b_lin = jax.random.uniform(k4, (LATENT,), jnp.float32, -lim_lin, lim_lin)

    # xavier_uniform for the (K+1) bias-free Linears of each of the P GCNs,
    # stored as (P, K+1, latent, out_dim), i.e. already transposed for X @ W.
    lim_gcn = jnp.sqrt(6.0 / (LATENT + OUT_DIM))
    W_gcn = jax.random.uniform(k5, (P, K + 1, LATENT, OUT_DIM), jnp.float32,
                               -lim_gcn, lim_gcn)

    ref = reference_forward(X, L, W_lin, b_lin, W_gcn)

    # f32 MXU path: tight check against the pure-JAX reference
    out = primary_capsule_forward(X, L, W_lin, b_lin, W_gcn, use_bf16=False)
    out = jax.block_until_ready(out)
    assert out.shape == (B, N, OUT_DIM * P), out.shape
    err = float(jnp.max(jnp.abs(out - ref)))
    assert jnp.allclose(out, ref, rtol=1e-3, atol=1e-3), err

    # bf16-MXU path (f32 accumulate / f32 recurrence carry): loose tolerance,
    # because the L^k recurrence compounds bf16 input rounding.
    out_bf16 = primary_capsule_forward(X, L, W_lin, b_lin, W_gcn, use_bf16=True)
    out_bf16 = jax.block_until_ready(out_bf16)
    assert out_bf16.shape == (B, N, OUT_DIM * P), out_bf16.shape
    err_bf16 = float(jnp.max(jnp.abs(out_bf16 - ref)))
    assert err_bf16 < 0.1 * (float(jnp.max(jnp.abs(ref))) + 1.0), err_bf16

    print("KERNEL_OK")
</pallas_src>

<mosaic_0001>
module attributes {stable_mosaic.version = 11 : i64} {
  func.func @kernel(%arg0: i32, %arg1: memref<1x16x8xf32, #tpu.memory_space<vmem>>, %arg2: memref<1x16x16xf32, #tpu.memory_space<vmem>>, %arg3: memref<8x32xf32, #tpu.memory_space<vmem>>, %arg4: memref<1x32xf32, #tpu.memory_space<vmem>>, %arg5: memref<4x96x128xf32, #tpu.memory_space<vmem>>, %arg6: memref<1x16x128xf32, #tpu.memory_space<vmem>>) attributes {dimension_semantics = [#tpu.dimension_semantics<parallel>], iteration_bounds = array<i64: 2>, scalar_prefetch = 0 : i64, scratch_operands = 0 : i64, tpu.core_type = #tpu.core_type<tc>, window_params = [{transform_indices = @transform_0, window_bounds = array<i64: 1, 16, 8>}, {transform_indices = @transform_1, window_bounds = array<i64: 1, 16, 16>}, {pipeline_mode = #tpu.pipeline_mode<synchronous>, transform_indices = @transform_2, window_bounds = array<i64: 8, 32>}, {pipeline_mode = #tpu.pipeline_mode<synchronous>, transform_indices = @transform_3, window_bounds = array<i64: 1, 32>}, {pipeline_mode = #tpu.pipeline_mode<synchronous>, transform_indices = @transform_4, window_bounds = array<i64: 4, 96, 128>}, {transform_indices = @transform_5, window_bounds = array<i64: 1, 16, 128>}]} {
    %c0 = arith.constant 0 : index
    %c0_0 = arith.constant 0 : index
    %c0_1 = arith.constant 0 : index
    %0 = vector.load %arg1[%c0, %c0_0, %c0_1] : memref<1x16x8xf32, #tpu.memory_space<vmem>>, vector<1x16x8xf32>
    %1 = vector.shape_cast %0 : vector<1x16x8xf32> to vector<16x8xf32>
    %c0_2 = arith.constant 0 : index
    %c0_3 = arith.constant 0 : index
    %2 = vector.load %arg3[%c0_2, %c0_3] : memref<8x32xf32, #tpu.memory_space<vmem>>, vector<8x32xf32>
    %cst = arith.constant dense<0.000000e+00> : vector<16x32xf32>
    %3 = tpu.matmul %1, %2, %cst {dimension_numbers = #tpu.dot_dimension_numbers<[1], [0], [0], [1], [0, 0, 1, 1], [], []>} : vector<16x8xf32>, vector<8x32xf32>, vector<16x32xf32> -> vector<16x32xf32>
    %c0_4 = arith.constant 0 : index
    %c0_5 = arith.constant 0 : index
    %4 = vector.load %arg4[%c0_4, %c0_5] : memref<1x32xf32, #tpu.memory_space<vmem>>, vector<1x32xf32>
    %5 = vector.broadcast %4 : vector<1x32xf32> to vector<16x32xf32>
    %6 = arith.addf %3, %5 : vector<16x32xf32>
    %7 = arith.mulf %6, %6 : vector<16x32xf32>
    %8 = arith.mulf %7, %6 : vector<16x32xf32>
    %9 = tpu.concatenate %6, %7, %8 in 1 : vector<16x32xf32>, vector<16x32xf32>, vector<16x32xf32> -> vector<16x96xf32>
    %c0_6 = arith.constant 0 : index
    %c0_7 = arith.constant 0 : index
    %c0_8 = arith.constant 0 : index
    %10 = vector.load %arg5[%c0_6, %c0_7, %c0_8] : memref<4x96x128xf32, #tpu.memory_space<vmem>>, vector<1x96x128xf32>
    %11 = vector.shape_cast %10 : vector<1x96x128xf32> to vector<96x128xf32>
    %c1 = arith.constant 1 : index
    %c0_9 = arith.constant 0 : index
    %c0_10 = arith.constant 0 : index
    %12 = vector.load %arg5[%c1, %c0_9, %c0_10] : memref<4x96x128xf32, #tpu.memory_space<vmem>>, vector<1x96x128xf32>
    %13 = vector.shape_cast %12 : vector<1x96x128xf32> to vector<96x128xf32>
    %c2 = arith.constant 2 : index
    %c0_11 = arith.constant 0 : index
    %c0_12 = arith.constant 0 : index
    %14 = vector.load %arg5[%c2, %c0_11, %c0_12] : memref<4x96x128xf32, #tpu.memory_space<vmem>>, vector<1x96x128xf32>
    %15 = vector.shape_cast %14 : vector<1x96x128xf32> to vector<96x128xf32>
    %c3 = arith.constant 3 : index
    %c0_13 = arith.constant 0 : index
    %c0_14 = arith.constant 0 : index
    %16 = vector.load %arg5[%c3, %c0_13, %c0_14] : memref<4x96x128xf32, #tpu.memory_space<vmem>>, vector<1x96x128xf32>
    %17 = vector.shape_cast %16 : vector<1x96x128xf32> to vector<96x128xf32>
    %c0_15 = arith.constant 0 : index
    %c0_16 = arith.constant 0 : index
    %c0_17 = arith.constant 0 : index
    %18 = vector.load %arg2[%c0_15, %c0_16, %c0_17] : memref<1x16x16xf32, #tpu.memory_space<vmem>>, vector<1x16x16xf32>
    %cst_18 = arith.constant dense<0.000000e+00> : vector<16x128xf32>
    %19 = tpu.matmul %9, %11, %cst_18 {dimension_numbers = #tpu.dot_dimension_numbers<[1], [0], [0], [1], [0, 0, 1, 1], [], []>} : vector<16x96xf32>, vector<96x128xf32>, vector<16x128xf32> -> vector<16x128xf32>
    %20 = vector.shape_cast %9 : vector<16x96xf32> to vector<1x16x96xf32>
    "tpu.trace_start"() <{level = 10 : i32, message = "bnm,bml->bnl"}> : () -> ()
    %cst_19 = arith.constant dense<0.000000e+00> : vector<1x16x96xf32>
    %21 = tpu.matmul %18, %20, %cst_19 {dimension_numbers = #tpu.dot_dimension_numbers<[2], [1], [1], [2], [0, 0, 0, 1, 1, 2], [0], [0]>} : vector<1x16x16xf32>, vector<1x16x96xf32>, vector<1x16x96xf32> -> vector<1x16x96xf32>
    "tpu.trace_stop"() : () -> ()
    %22 = vector.shape_cast %21 : vector<1x16x96xf32> to vector<16x96xf32>
    %cst_20 = arith.constant dense<0.000000e+00> : vector<16x128xf32>
    %23 = tpu.matmul %22, %13, %cst_20 {dimension_numbers = #tpu.dot_dimension_numbers<[1], [0], [0], [1], [0, 0, 1, 1], [], []>} : vector<16x96xf32>, vector<96x128xf32>, vector<16x128xf32> -> vector<16x128xf32>
    %24 = arith.addf %19, %23 : vector<16x128xf32>
    "tpu.trace_start"() <{level = 10 : i32, message = "bnm,bml->bnl"}> : () -> ()
    %cst_21 = arith.constant dense<0.000000e+00> : vector<1x16x96xf32>
    %25 = tpu.matmul %18, %21, %cst_21 {dimension_numbers = #tpu.dot_dimension_numbers<[2], [1], [1], [2], [0, 0, 0, 1, 1, 2], [0], [0]>} : vector<1x16x16xf32>, vector<1x16x96xf32>, vector<1x16x96xf32> -> vector<1x16x96xf32>
    "tpu.trace_stop"() : () -> ()
    %26 = vector.shape_cast %25 : vector<1x16x96xf32> to vector<16x96xf32>
    %cst_22 = arith.constant dense<0.000000e+00> : vector<16x128xf32>
    %27 = tpu.matmul %26, %15, %cst_22 {dimension_numbers = #tpu.dot_dimension_numbers<[1], [0], [0], [1], [0, 0, 1, 1], [], []>} : vector<16x96xf32>, vector<96x128xf32>, vector<16x128xf32> -> vector<16x128xf32>
    %28 = arith.addf %24, %27 : vector<16x128xf32>
    "tpu.trace_start"() <{level = 10 : i32, message = "bnm,bml->bnl"}> : () -> ()
    %cst_23 = arith.constant dense<0.000000e+00> : vector<1x16x96xf32>
    %29 = tpu.matmul %18, %25, %cst_23 {dimension_numbers = #tpu.dot_dimension_numbers<[2], [1], [1], [2], [0, 0, 0, 1, 1, 2], [0], [0]>} : vector<1x16x16xf32>, vector<1x16x96xf32>, vector<1x16x96xf32> -> vector<1x16x96xf32>
    "tpu.trace_stop"() : () -> ()
    %30 = vector.shape_cast %29 : vector<1x16x96xf32> to vector<16x96xf32>
    %cst_24 = arith.constant dense<0.000000e+00> : vector<16x128xf32>
    %31 = tpu.matmul %30, %17, %cst_24 {dimension_numbers = #tpu.dot_dimension_numbers<[1], [0], [0], [1], [0, 0, 1, 1], [], []>} : vector<16x96xf32>, vector<96x128xf32>, vector<16x128xf32> -> vector<16x128xf32>
    %32 = arith.addf %28, %31 : vector<16x128xf32>
    %cst_25 = arith.constant 0.000000e+00 : f32
    %33 = vector.broadcast %cst_25 : f32 to vector<16x128xf32>
    %34 = arith.maximumf %32, %33 : vector<16x128xf32>
    %35 = vector.shape_cast %34 : vector<16x128xf32> to vector<1x16x128xf32>
    %c0_26 = arith.constant 0 : index
    %c0_27 = arith.constant 0 : index
    %c0_28 = arith.constant 0 : index
    %36 = vector.load %arg6[%c0_26, %c0_27, %c0_28] : memref<1x16x128xf32, #tpu.memory_space<vmem>>, vector<1x16x128xf32>
    tpu.vector_store %arg6[%c0_26, %c0_27, %c0_28], %35 {strides = array<i32>} : memref<1x16x128xf32, #tpu.memory_space<vmem>>, vector<1x16x128xf32>,
    return
  }
  func.func @transform_0(%arg0: i32) -> (i32, i32, i32) {
    %c0_i32 = arith.constant 0 : i32
    %c0_i32_0 = arith.constant 0 : i32
    %c0_i32_1 = arith.constant 0 : i32
    return %arg0, %c0_i32, %c0_i32_0 : i32, i32, i32
  }
  func.func @transform_1(%arg0: i32) -> (i32, i32, i32) {
    %c0_i32 = arith.constant 0 : i32
    %c0_i32_0 = arith.constant 0 : i32
    %c0_i32_1 = arith.constant 0 : i32
    return %arg0, %c0_i32, %c0_i32_0 : i32, i32, i32
  }
  func.func @transform_2(%arg0: i32) -> (i32, i32) {
    %c0_i32 = arith.constant 0 : i32
    %c0_i32_0 = arith.constant 0 : i32
    %c0_i32_1 = arith.constant 0 : i32
    return %c0_i32, %c0_i32_0 : i32, i32
  }
  func.func @transform_3(%arg0: i32) -> (i32, i32) {
    %c0_i32 = arith.constant 0 : i32
    %c0_i32_0 = arith.constant 0 : i32
    %c0_i32_1 = arith.constant 0 : i32
    return %c0_i32, %c0_i32_0 : i32, i32
  }
  func.func @transform_4(%arg0: i32) -> (i32, i32, i32) {
    %c0_i32 = arith.constant 0 : i32
    %c0_i32_0 = arith.constant 0 : i32
    %c0_i32_1 = arith.constant 0 : i32
    %c0_i32_2 = arith.constant 0 : i32
    return %c0_i32, %c0_i32_0, %c0_i32_1 : i32, i32, i32
  }
  func.func @transform_5(%arg0: i32) -> (i32, i32, i32) {
    %c0_i32 = arith.constant 0 : i32
    %c0_i32_0 = arith.constant 0 : i32
    %c0_i32_1 = arith.constant 0 : i32
    return %arg0, %c0_i32, %c0_i32_0 : i32, i32, i32
  }
}

</mosaic_0001>

<llo_original>
// kernel: tpu_custom_call.1
$region0: #{tpu_custom_call.1}
  #allocation0 [shape = 'u32[]', space=smem, size = 0x4, offset = 0x4, fixed_abs, tag = 'smem constant byte address 0x4 - core index']
  #allocation1 [shape = 'u32[144,128]{1,0:T(1,128)}', space=vmem, size = 0x12000, scoped, tag = 'internal scratch']
  %s0 = inlined_call_operand.vmem [shape: f32[2,16,8], index: 0, kind: input, shape index: {}]
  %s1 = inlined_call_operand.vmem [shape: f32[2,16,16], index: 1, kind: input, shape index: {}]
  %s2 = inlined_call_operand.vmem [shape: f32[8,32], index: 2, kind: input, shape index: {}]
  %s3 = inlined_call_operand.vmem [shape: f32[1,32], index: 3, kind: input, shape index: {}]
  %s4 = inlined_call_operand.hbm [shape: f32[4,96,128], index: 4, kind: input, shape index: {}]
  %s5 = inlined_call_operand.hbm [shape: f32[2,16,128], index: 5, kind: output, shape index: {}]
  %s6 = sld [smem:[#allocation0]]
  $region57: #{tpu_custom_call.1} parent=0
    _
  %s8 = ssub.s32 1, %s6
  %s9 = scalar_select 0, %s8, %s6
  $region1: #{tpu_custom_call.1} parent=0
    #allocation2 [shape = 'u8[196608]{0}', space=vmem, size = 0x30000, scoped, tag = 'input window, operand 4, single buffered']
    #allocation3 [shape = 's32[2]{0}', space=sflag, size = 0x8, scoped, tag = 'scoped memory for tpu_custom_call.1']
    #allocation4 [shape = 's32[2]{0}', space=sflag, size = 0x8, scoped, tag = 'scoped memory for tpu_custom_call.1']
    #allocation5 [shape = 'u8[16384]{0}', space=vmem, size = 0x4000, scoped, tag = 'output window, operand 0']
    %10 = vsyncpa [#allocation3], 0
    %11 = vsyncpa [#allocation4], 0
    %s12 = scalar_lea.sflag [#allocation4], 1
    %13 = vsyncpa %s12, 0
    loop: start=0, step=1, limit=4
    $region2: #{tpu_custom_call.1} parent=1 // loop_pre_header
      _
    $region3: #{tpu_custom_call.1} parent=1 // loop_header
      %s15 = sphi 0, %s19
      %p16 = scmp.ge.s32.totalorder %s15, 4
      %s25 = sphi 0, %s27
      %s28 = sphi 0, %s25
      %s29 = sphi 0, %s28
      %s45 = sphi 0, %s29
      %s51 = sphi 0, %s53
      %s54 = sphi 0, %s51
      %s55 = sphi 0, %s54
      %s71 = sphi 0, %s55
      %s75 = sphi 0, %s75
      %s77 = sphi 0, %s75
      %s78 = sphi 0, %s77
      %s92 = sphi 0, %s78
      %s96 = sphi 0, %s96
      %s98 = sphi 0, %s96
      %s99 = sphi 0, %s98
      %s113 = sphi 0, %s99
      %s117 = sphi 0, %s117
      %s119 = sphi 0, %s117
      %s120 = sphi 0, %s119
      %s134 = sphi 0, %s120
      %s140 = sphi 0, %s142
      %s143 = sphi 0, %s140
      %s144 = sphi 0, %s143
      %s160 = sphi 0, %s144
    $region4: #{tpu_custom_call.1} parent=1 // loop_header_branch
      %18 = sbr.rel (%p16) target = $region8
    $region5: #{tpu_custom_call.1} parent=1 // loop_body
      %s20 = ssub.s32 %s15, 1
      %s21 = ssub.s32 %s15, 2
      %s22 = sadd.s32 %s15, 1
      %s23 = ssub.s32 %s15, %s22
      %p24 = scmp.eq.s32.totalorder %s23, 0
      %s26 = sadd.s32 %s25, 1
      %s27 = scalar_select %p24, %s25, %s26
      %p30 = pneg %p24
      %p31 = scmp.eq.s32.totalorder %s15, 1
      %p32 = por %p30, %p31
      %p33 = scmp.ne.s32.totalorder %s25, %s28
      %p34 = scmp.eq.s32.totalorder %s15, 0
      %p35 = por %p33, %p34
      %p36 = scmp.ne.s32.totalorder %s25, %s28
      %p37 = scmp.eq.s32.totalorder %s20, 1
      %p38 = por %p36, %p37
      %p39 = scmp.ne.s32.totalorder %s28, %s29
      %p40 = scmp.eq.s32.totalorder %s20, 0
      %p41 = por %p39, %p40
      %p42 = scmp.ne.s32.totalorder %s28, %s29
      %p43 = scmp.eq.s32.totalorder %s21, 1
      %p44 = por %p42, %p43
      %p46 = scmp.ne.s32.totalorder %s29, %s45
      %p47 = scmp.eq.s32.totalorder %s21, 0
      %p48 = por %p46, %p47
      %s49 = ssub.s32 %s15, %s22
      %p50 = scmp.eq.s32.totalorder %s49, 0
      %s52 = sadd.s32 %s51, 1
      %s53 = scalar_select %p50, %s51, %s52
      %p56 = pneg %p50
      %p57 = scmp.eq.s32.totalorder %s15, 1
      %p58 = por %p56, %p57
      %p59 = scmp.ne.s32.totalorder %s51, %s54
      %p60 = scmp.eq.s32.totalorder %s15, 0
      %p61 = por %p59, %p60
      %p62 = scmp.ne.s32.totalorder %s51, %s54
      %p63 = scmp.eq.s32.totalorder %s20, 1
      %p64 = por %p62, %p63
      %p65 = scmp.ne.s32.totalorder %s54, %s55
      %p66 = scmp.eq.s32.totalorder %s20, 0
      %p67 = por %p65, %p66
      %p68 = scmp.ne.s32.totalorder %s54, %s55
      %p69 = scmp.eq.s32.totalorder %s21, 1
      %p70 = por %p68, %p69
      %p72 = scmp.ne.s32.totalorder %s55, %s71
      %p73 = scmp.eq.s32.totalorder %s21, 0
      %p74 = por %p72, %p73
      %s76 = sadd.s32 %s75, 1
      %p79 = scmp.eq.s32.totalorder %s15, 1
      %p80 = scmp.ne.s32.totalorder %s75, %s77
      %p81 = scmp.eq.s32.totalorder %s15, 0
      %p82 = por %p80, %p81
      %p83 = scmp.ne.s32.totalorder %s75, %s77
      %p84 = scmp.eq.s32.totalorder %s20, 1
      %p85 = por %p83, %p84
      %p86 = scmp.ne.s32.totalorder %s77, %s78
      %p87 = scmp.eq.s32.totalorder %s20, 0
      %p88 = por %p86, %p87
      %p89 = scmp.ne.s32.totalorder %s77, %s78
      %p90 = scmp.eq.s32.totalorder %s21, 1
      %p91 = por %p89, %p90
      %p93 = scmp.ne.s32.totalorder %s78, %s92
      %p94 = scmp.eq.s32.totalorder %s21, 0
      %p95 = por %p93, %p94
      %s97 = sadd.s32 %s96, 1
      %p100 = scmp.eq.s32.totalorder %s15, 1
      %p101 = scmp.ne.s32.totalorder %s96, %s98
      %p102 = scmp.eq.s32.totalorder %s15, 0
      %p103 = por %p101, %p102
      %p104 = scmp.ne.s32.totalorder %s96, %s98
      %p105 = scmp.eq.s32.totalorder %s20, 1
      %p106 = por %p104, %p105
      %p107 = scmp.ne.s32.totalorder %s98, %s99
      %p108 = scmp.eq.s32.totalorder %s20, 0
      %p109 = por %p107, %p108
      %p110 = scmp.ne.s32.totalorder %s98, %s99
      %p111 = scmp.eq.s32.totalorder %s21, 1
      %p112 = por %p110, %p111
      %p114 = scmp.ne.s32.totalorder %s99, %s113
      %p115 = scmp.eq.s32.totalorder %s21, 0
      %p116 = por %p114, %p115
      %s118 = sadd.s32 %s117, 1
      %p121 = scmp.eq.s32.totalorder %s15, 1
      %p122 = scmp.ne.s32.totalorder %s117, %s119
      %p123 = scmp.eq.s32.totalorder %s15, 0
      %p124 = por %p122, %p123
      %p125 = scmp.ne.s32.totalorder %s117, %s119
      %p126 = scmp.eq.s32.totalorder %s20, 1
      %p127 = por %p125, %p126
      %p128 = scmp.ne.s32.totalorder %s119, %s120
      %p129 = scmp.eq.s32.totalorder %s20, 0
      %p130 = por %p128, %p129
      %p131 = scmp.ne.s32.totalorder %s119, %s120
      %p132 = scmp.eq.s32.totalorder %s21, 1
      %p133 = por %p131, %p132
      %p135 = scmp.ne.s32.totalorder %s120, %s134
      %p136 = scmp.eq.s32.totalorder %s21, 0
      %p137 = por %p135, %p136
      %s138 = ssub.s32 %s15, %s22
      %p139 = scmp.eq.s32.totalorder %s138, 0
      %s141 = sadd.s32 %s140, 1
      %s142 = scalar_select %p139, %s140, %s141
      %p145 = pneg %p139
      %p146 = scmp.eq.s32.totalorder %s15, 1
      %p147 = por %p145, %p146
      %p148 = scmp.ne.s32.totalorder %s140, %s143
      %p149 = scmp.eq.s32.totalorder %s15, 0
      %p150 = por %p148, %p149
      %p151 = scmp.ne.s32.totalorder %s140, %s143
      %p152 = scmp.eq.s32.totalorder %s20, 1
      %p153 = por %p151, %p152
      %p154 = scmp.ne.s32.totalorder %s143, %s144
      %p155 = scmp.eq.s32.totalorder %s20, 0
      %p156 = por %p154, %p155
      %p157 = scmp.ne.s32.totalorder %s143, %s144
      %p158 = scmp.eq.s32.totalorder %s21, 1
      %p159 = por %p157, %p158
      %p161 = scmp.ne.s32.totalorder %s144, %s160
      %p162 = scmp.eq.s32.totalorder %s21, 0
      %p163 = por %p161, %p162
      %p164 = scmp.le.s32.totalorder 1, %s15
      %p165 = scmp.lt.s32.totalorder %s15, 3
      %p166 = pnand %p164, %p165
      %p167 = pneg %p166
      // Predicated region
      $region9: #{tpu_custom_call.1} parent=5 // pred_check
        _
      $region10: #{tpu_custom_call.1} parent=5 // pred_check_branch
        %169 = sbr.rel (%p166) target = $region12
      $region11: #{tpu_custom_call.1} parent=5 // pred_region
        %s170 = ssub.s32 %s15, 1
        // Predicated region
        $region13: #{tpu_custom_call.1} parent=11 // pred_check
          %p171 = pneg %p88
        $region14: #{tpu_custom_call.1} parent=11 // pred_check_branch
          %173 = sbr.rel (%p171) target = $region16
        $region15: #{tpu_custom_call.1} parent=11 // pred_region
          _
        $region16: #{tpu_custom_call.1} parent=11 // pred_fallthru
          _
        // Predicated region
        $region17: #{tpu_custom_call.1} parent=11 // pred_check
          %p174 = pneg %p109
        $region18: #{tpu_custom_call.1} parent=11 // pred_check_branch
          %176 = sbr.rel (%p174) target = $region20
        $region19: #{tpu_custom_call.1} parent=11 // pred_region
          _
        $region20: #{tpu_custom_call.1} parent=11 // pred_fallthru
          _
        // Predicated region
        $region21: #{tpu_custom_call.1} parent=11 // pred_check
          %p177 = pneg %p130
        $region22: #{tpu_custom_call.1} parent=11 // pred_check_branch
          %179 = sbr.rel (%p177) target = $region24
        $region23: #{tpu_custom_call.1} parent=11 // pred_region
          %s181 = ssub.s32 6144, 6144
          %182 = vsyncadd [#allocation3], %s181
          %s183 = sshll.u32 [#allocation2], 4
          %s184 = int_to_ptr.vmem [resolvable:$true] %s183
          %189 = dma.hbm_to_vmem [thread:$0]  %s4, 6144, %s184, [#allocation3], 128, 128, 8
        $region24: #{tpu_custom_call.1} parent=11 // pred_fallthru
          _
      $region12: #{tpu_custom_call.1} parent=5 // pred_fallthru
        _
      %p190 = scmp.lt.s32.totalorder %s15, 2
      // Predicated region
      $region25: #{tpu_custom_call.1} parent=5 // pred_check
        %p191 = pneg %p190
      $region26: #{tpu_custom_call.1} parent=5 // pred_check_branch
        %193 = sbr.rel (%p191) target = $region28
      $region27: #{tpu_custom_call.1} parent=5 // pred_region
        // Predicated region
        $region29: #{tpu_custom_call.1} parent=27 // pred_check
          %p194 = pneg %p35
        $region30: #{tpu_custom_call.1} parent=27 // pred_check_branch
          %196 = sbr.rel (%p194) target = $region32
        $region31: #{tpu_custom_call.1} parent=27 // pred_region
          %p197 = scmp.lt.s32.totalorder %s15, 1
          %s198 = scalar_select %p197, %s15, 1
          %s199 = smul.addr %s198, 2
          %s200 = smul.addr %s199, 8
          %s201 = scalar_lea.vmem %s0, %s200
        $region32: #{tpu_custom_call.1} parent=27 // pred_fallthru
          _
        // Predicated region
        $region33: #{tpu_custom_call.1} parent=27 // pred_check
          %p202 = pneg %p61
        $region34: #{tpu_custom_call.1} parent=27 // pred_check_branch
          %204 = sbr.rel (%p202) target = $region36
        $region35: #{tpu_custom_call.1} parent=27 // pred_region
          %p205 = scmp.lt.s32.totalorder %s15, 1
          %s206 = scalar_select %p205, %s15, 1
          %s207 = smul.addr %s206, 2
          %s208 = smul.addr %s207, 8
          %s209 = scalar_lea.vmem %s1, %s208
        $region36: #{tpu_custom_call.1} parent=27 // pred_fallthru
          _
      $region28: #{tpu_custom_call.1} parent=5 // pred_fallthru
        _
      %p210 = scmp.le.s32.totalorder 1, %s15
      %p211 = scmp.lt.s32.totalorder %s15, 3
      %p212 = pnand %p210, %p211
      %p213 = pneg %p212
      // Predicated region
      $region37: #{tpu_custom_call.1} parent=5 // pred_check
        _
      $region38: #{tpu_custom_call.1} parent=5 // pred_check_branch
        %215 = sbr.rel (%p212) target = $region40
      $region39: #{tpu_custom_call.1} parent=5 // pred_region
        %s216 = ssub.s32 %s15, 1
        // Predicated region
        $region41: #{tpu_custom_call.1} parent=39 // pred_check
          %p217 = pneg %p130
        $region42: #{tpu_custom_call.1} parent=39 // pred_check_branch
          %219 = sbr.rel (%p217) target = $region44
        $region43: #{tpu_custom_call.1} parent=39 // pred_region
          %220 = dma.done [#allocation3], 6144
        $region44: #{tpu_custom_call.1} parent=39 // pred_fallthru
          _
        %p221 = scmp.lt.s32.totalorder %s20, 1
        %s222 = scalar_select %p221, %s20, 1
        %s223 = smul.addr %s222, 2
        %s224 = smul.addr %s223, 8
        %s225 = scalar_lea.vmem %s0, %s224
        %p226 = pneg %p41
        %p227 = pneg %p38
        %p228 = scmp.lt.s32.totalorder %s20, 1
        %s229 = scalar_select %p228, %s20, 1
        %s230 = smul.addr %s229, 2
        %s231 = smul.addr %s230, 8
        %s232 = scalar_lea.vmem %s1, %s231
        %p233 = pneg %p67
        %p234 = pneg %p64
        %p235 = pneg %p88
        %p236 = pneg %p85
        %p237 = pneg %p109
        %p238 = pneg %p106
        %p239 = pneg %p130
        %p240 = pneg %p127
        %p241 = pneg %p156
        %p242 = pneg %p153
        %s243 = sand.u32 %s143, 1
        %s244 = scalar_lea.sflag [#allocation4], %s243
        %s245 = sand.u32 %s143, 1
        %s246 = smul.addr %s245, 16
        %s247 = scalar_lea.vmem [#allocation5], %s246
        %p248 = scmp.lt.s32.totalorder %s20, 1
        %s249 = scalar_select %p248, %s20, 1
        %s250 = smul.addr %s249, 2
        %s251 = smul.addr %s250, 8
        %s252 = scalar_lea.vmem %s0, %s251
        %p253 = scmp.lt.s32.totalorder %s20, 1
        %s254 = scalar_select %p253, %s20, 1
        %s255 = smul.addr %s254, 2
        %s256 = smul.addr %s255, 8
        %s257 = scalar_lea.vmem %s1, %s256
        %v258 = vld [vmem:[%s252] sm:$0xff]
        %v259 = vld [vmem:[%s252 + $0x8] sm:$0xff]
        %v260 = vld [vmem:[%s2] sm:$0xff]
        %v261 = vld [vmem:[%s3] sm:$0x1]
        %v263 = vlaneseq
        %v264 = vshrl.u32 %v263, 7
        %v265 = vsub.s32 0, %v264
        %v266 = vrot.slane %v261, %v265
        %vm268 = vcmask 64512
        %v270 = vsel %vm268, %v258, 0
        %v273 = vsel %vm268, %v259, 0
        %275 = vmatprep.subr.mxu0 0.0
        %276 = vmatpush1.msra.mxu0 0.0
        %277 = vmatprep.subr.mxu0 0.0
        %278 = vmatpush1.msra.mxu0 0.0
        %279 = vmatprep.subr.mxu0 0.0
        %280 = vmatpush1.msra.mxu0 0.0
        %281 = vmatprep.subr.mxu0 0.0
        %282 = vmatpush1.msra.mxu0 0.0
        %283 = vmatprep.subr.mxu0 0.0
        %284 = vmatpush1.msra.mxu0 0.0
        %285 = vmatprep.subr.mxu0 0.0
        %286 = vmatpush1.msra.mxu0 0.0
        %287 = vmatprep.subr.mxu0 0.0
        %288 = vmatpush1.msra.mxu0 0.0
        %289 = vmatprep.subr.mxu0 0.0
        %290 = vmatpush1.msra.mxu0 0.0
        %291 = vmatprep.subr.mxu0 0.0
        %292 = vmatpush1.msra.mxu0 0.0
        %293 = vmatprep.subr.mxu0 0.0
        %294 = vmatpush1.msra.mxu0 0.0
        %295 = vmatprep.subr.mxu0 0.0
        %296 = vmatpush1.msra.mxu0 0.0
        %297 = vmatprep.subr.mxu0 0.0
        %298 = vmatpush1.msra.mxu0 0.0
        %299 = vmatprep.subr.mxu0 0.0
        %300 = vmatpush1.msra.mxu0 0.0
        %301 = vmatprep.subr.mxu0 0.0
        %302 = vmatpush1.msra.mxu0 0.0
        %303 = vmatprep.subr.mxu0 0.0
        %304 = vmatpush1.msra.mxu0 0.0
        %305 = vmatprep.subr.mxu0 0.0
        %306 = vmatpush1.msra.mxu0 %v260
        %307 = vmatprep.subr.mxu0 0.0
        %308 = vmatpush2.msra.mxu0 0.0
        %309 = vmatprep.subr.mxu0 0.0
        %310 = vmatpush2.msra.mxu0 0.0
        %311 = vmatprep.subr.mxu0 0.0
        %312 = vmatpush2.msra.mxu0 0.0
        %313 = vmatprep.subr.mxu0 0.0
        %314 = vmatpush2.msra.mxu0 0.0
        %315 = vmatprep.subr.mxu0 0.0
        %316 = vmatpush2.msra.mxu0 0.0
        %317 = vmatprep.subr.mxu0 0.0
        %318 = vmatpush2.msra.mxu0 0.0
        %319 = vmatprep.subr.mxu0 0.0
        %320 = vmatpush2.msra.mxu0 0.0
        %321 = vmatprep.subr.mxu0 0.0
        %322 = vmatpush2.msra.mxu0 0.0
        %323 = vmatprep.subr.mxu0 0.0
        %324 = vmatpush2.msra.mxu0 0.0
        %325 = vmatprep.subr.mxu0 0.0
        %326 = vmatpush2.msra.mxu0 0.0
        %327 = vmatprep.subr.mxu0 0.0
        %328 = vmatpush2.msra.mxu0 0.0
        %329 = vmatprep.subr.mxu0 0.0
        %330 = vmatpush2.msra.mxu0 0.0
        %331 = vmatprep.subr.mxu0 0.0
        %332 = vmatpush2.msra.mxu0 0.0
        %333 = vmatprep.subr.mxu0 0.0
        %334 = vmatpush2.msra.mxu0 0.0
        %335 = vmatprep.subr.mxu0 0.0
        %336 = vmatpush2.msra.mxu0 0.0
        %337 = vmatprep.subr.mxu0 0.0
        %338 = vmatpush2.msra.mxu0 0.0
        %339 = vmatprep.mubr.f32.mxu0 0.0
        %340 = vmatmul.mubr.f32.gmra.mxu0 %v270
        %v341 = vpop.f32.mrf.mxu0
        %v342 = vadd.f32 %v266, %v341
        %v343 = vpop.f32.mrf.mxu0
        %344 = vmatprep.mubr.f32.mxu0 0.0
        %345 = vmatmul.mubr.f32.gmra.mxu0 %v273
        %v346 = vpop.f32.mrf.mxu0
        %v347 = vadd.f32 %v266, %v346
        %v348 = vpop.f32.mrf.mxu0
        %349 = vdwg.mxu0
        %v350 = vmul.f32 %v342, %v342
        %v351 = vmul.f32 %v347, %v347
        %v352 = vmul.f32 %v350, %v342
        %v353 = vmul.f32 %v351, %v347
        %356 = vrot.lane.b32.xlu0 %v350, 32
        %v357 = vpop.permute.xlu0 %356
        %358 = vrot.lane.b32.xlu0 %v351, 32
        %v359 = vpop.permute.xlu0 %358
        %364 = vrot.lane.b32.xlu0 %v352, 64
        %v365 = vpop.permute.xlu0 %364
        %366 = vrot.lane.b32.xlu0 %v353, 64
        %v367 = vpop.permute.xlu0 %366
        %vm370 = vcmask 261120
        %v371 = vsel %vm370, %v342, %v357
        %v372 = vsel %vm370, %v347, %v359
        %vm373 = vcmask 523264
        %v374 = vsel %vm373, %v371, %v365
        %v375 = vsel %vm373, %v372, %v367
        %v376 = vld [vmem:[#allocation2] sm:$0xff]
        %v377 = vld [vmem:[#allocation2 + $0x8] sm:$0xff]
        %v378 = vld [vmem:[#allocation2 + $0x10] sm:$0xff]
        %v379 = vld [vmem:[#allocation2 + $0x18] sm:$0xff]
        %v380 = vld [vmem:[#allocation2 + $0x20] sm:$0xff]
        %v381 = vld [vmem:[#allocation2 + $0x28] sm:$0xff]
        %v382 = vld [vmem:[#allocation2 + $0x30] sm:$0xff]
        %v383 = vld [vmem:[#allocation2 + $0x38] sm:$0xff]
        %v384 = vld [vmem:[#allocation2 + $0x40] sm:$0xff]
        %v385 = vld [vmem:[#allocation2 + $0x48] sm:$0xff]
        %v386 = vld [vmem:[#allocation2 + $0x50] sm:$0xff]
        %v387 = vld [vmem:[#allocation2 + $0x58] sm:$0xff]
        %s388 = scalar_lea.vmem [#allocation2], 96
        %v389 = vld [vmem:[%s388] sm:$0xff]
        %v390 = vld [vmem:[%s388 + $0x8] sm:$0xff]
        %v391 = vld [vmem:[%s388 + $0x10] sm:$0xff]
        %v392 = vld [vmem:[%s388 + $0x18] sm:$0xff]
        %v393 = vld [vmem:[%s388 + $0x20] sm:$0xff]
        %v394 = vld [vmem:[%s388 + $0x28] sm:$0xff]
        %v395 = vld [vmem:[%s388 + $0x30] sm:$0xff]
        %v396 = vld [vmem:[%s388 + $0x38] sm:$0xff]
        %v397 = vld [vmem:[%s388 + $0x40] sm:$0xff]
        %v398 = vld [vmem:[%s388 + $0x48] sm:$0xff]
        %v399 = vld [vmem:[%s388 + $0x50] sm:$0xff]
        %v400 = vld [vmem:[%s388 + $0x58] sm:$0xff]
        %s401 = scalar_lea.vmem [#allocation2], 192
        %v402 = vld [vmem:[%s401] sm:$0xff]
        %v403 = vld [vmem:[%s401 + $0x8] sm:$0xff]
        %v404 = vld [vmem:[%s401 + $0x10] sm:$0xff]
        %v405 = vld [vmem:[%s401 + $0x18] sm:$0xff]
        %v406 = vld [vmem:[%s401 + $0x20] sm:$0xff]
        %v407 = vld [vmem:[%s401 + $0x28] sm:$0xff]
        %v408 = vld [vmem:[%s401 + $0x30] sm:$0xff]
        %v409 = vld [vmem:[%s401 + $0x38] sm:$0xff]
        %v410 = vld [vmem:[%s401 + $0x40] sm:$0xff]
        %v411 = vld [vmem:[%s401 + $0x48] sm:$0xff]
        %v412 = vld [vmem:[%s401 + $0x50] sm:$0xff]
        %v413 = vld [vmem:[%s401 + $0x58] sm:$0xff]
        %s414 = scalar_lea.vmem [#allocation2], 288
        %v415 = vld [vmem:[%s414] sm:$0xff]
        %v416 = vld [vmem:[%s414 + $0x8] sm:$0xff]
        %v417 = vld [vmem:[%s414 + $0x10] sm:$0xff]
        %v418 = vld [vmem:[%s414 + $0x18] sm:$0xff]
        %v419 = vld [vmem:[%s414 + $0x20] sm:$0xff]
        %v420 = vld [vmem:[%s414 + $0x28] sm:$0xff]
        %v421 = vld [vmem:[%s414 + $0x30] sm:$0xff]
        %v422 = vld [vmem:[%s414 + $0x38] sm:$0xff]
        %v423 = vld [vmem:[%s414 + $0x40] sm:$0xff]
        %v424 = vld [vmem:[%s414 + $0x48] sm:$0xff]
        %v425 = vld [vmem:[%s414 + $0x50] sm:$0xff]
        %v426 = vld [vmem:[%s414 + $0x58] sm:$0xff]
        %v427 = vld [vmem:[%s257] sm:$0xff]
        %v428 = vld [vmem:[%s257 + $0x8] sm:$0xff]
        %vm429 = vcmask 130048
        %v431 = vsel %vm429, %v427, 0
        %v434 = vsel %vm429, %v428, 0
        %436 = vmatprep.subr.mxu0 0.0
        %437 = vmatpush1.msra.mxu0 0.0
        %438 = vmatprep.subr.mxu0 0.0
        %439 = vmatpush1.msra.mxu0 0.0
        %440 = vmatprep.subr.mxu0 0.0
        %441 = vmatpush1.msra.mxu0 0.0
        %442 = vmatprep.subr.mxu0 0.0
        %443 = vmatpush1.msra.mxu0 0.0
        %444 = vmatprep.subr.mxu0 0.0
        %445 = vmatpush1.msra.mxu0 0.0
        %446 = vmatprep.subr.mxu0 0.0
        %447 = vmatpush1.msra.mxu0 0.0
        %448 = vmatprep.subr.mxu0 0.0
        %449 = vmatpush1.msra.mxu0 0.0
        %450 = vmatprep.subr.mxu0 0.0
        %451 = vmatpush1.msra.mxu0 0.0
        %452 = vmatprep.subr.mxu0 0.0
        %453 = vmatpush1.msra.mxu0 0.0
        %454 = vmatprep.subr.mxu0 0.0
        %455 = vmatpush1.msra.mxu0 0.0
        %456 = vmatprep.subr.mxu0 0.0
        %457 = vmatpush1.msra.mxu0 0.0
        %458 = vmatprep.subr.mxu0 0.0
        %459 = vmatpush1.msra.mxu0 0.0
        %460 = vmatprep.subr.mxu0 0.0
        %461 = vmatpush1.msra.mxu0 0.0
        %462 = vmatprep.subr.mxu0 0.0
        %463 = vmatpush1.msra.mxu0 0.0
        %464 = vmatprep.subr.mxu0 0.0
        %465 = vmatpush1.msra.mxu0 %v375
        %466 = vmatprep.subr.mxu0 0.0
        %467 = vmatpush1.msra.mxu0 %v374
        %468 = vmatprep.subr.mxu0 0.0
        %469 = vmatpush2.msra.mxu0 0.0
        %470 = vmatprep.subr.mxu0 0.0
        %471 = vmatpush2.msra.mxu0 0.0
        %472 = vmatprep.subr.mxu0 0.0
        %473 = vmatpush2.msra.mxu0 0.0
        %474 = vmatprep.subr.mxu0 0.0
        %475 = vmatpush2.msra.mxu0 0.0
        %476 = vmatprep.subr.mxu0 0.0
        %477 = vmatpush2.msra.mxu0 0.0
        %478 = vmatprep.subr.mxu0 0.0
        %479 = vmatpush2.msra.mxu0 0.0
        %480 = vmatprep.subr.mxu0 0.0
        %481 = vmatpush2.msra.mxu0 0.0
        %482 = vmatprep.subr.mxu0 0.0
        %483 = vmatpush2.msra.mxu0 0.0
        %484 = vmatprep.subr.mxu0 0.0
        %485 = vmatpush2.msra.mxu0 0.0
        %486 = vmatprep.subr.mxu0 0.0
        %487 = vmatpush2.msra.mxu0 0.0
        %488 = vmatprep.subr.mxu0 0.0
        %489 = vmatpush2.msra.mxu0 0.0
        %490 = vmatprep.subr.mxu0 0.0
        %491 = vmatpush2.msra.mxu0 0.0
        %492 = vmatprep.subr.mxu0 0.0
        %493 = vmatpush2.msra.mxu0 0.0
        %494 = vmatprep.subr.mxu0 0.0
        %495 = vmatpush2.msra.mxu0 0.0
        %496 = vmatprep.subr.mxu0 0.0
        %497 = vmatpush2.msra.mxu0 0.0
        %498 = vmatprep.subr.mxu0 0.0
        %499 = vmatpush2.msra.mxu0 0.0
        %500 = vmatprep.mubr.f32.mxu0 0.0
        %501 = vmatmul.mubr.f32.gmra.mxu0 %v431
        %v502 = vpop.f32.mrf.mxu0
        %v503 = vadd.f32 0.0, %v502
        %v504 = vpop.f32.mrf.mxu0
        %505 = vmatprep.mubr.f32.mxu0 0.0
        %506 = vmatmul.mubr.f32.gmra.mxu0 %v434
        %v507 = vpop.f32.mrf.mxu0
        %v508 = vadd.f32 0.0, %v507
        %v509 = vpop.f32.mrf.mxu0
        %510 = vdwg.mxu0
        %vm511 = vcmask 785408
        %v513 = vsel %vm511, %v503, 0
        %v516 = vsel %vm511, %v508, 0
        %518 = vmatprep.subr.mxu0 0.0
        %519 = vmatpush1.msra.mxu0 0.0
        %520 = vmatprep.subr.mxu0 0.0
        %521 = vmatpush1.msra.mxu0 0.0
        %522 = vmatprep.subr.mxu0 0.0
        %523 = vmatpush1.msra.mxu0 0.0
        %524 = vmatprep.subr.mxu0 0.0
        %525 = vmatpush1.msra.mxu0 0.0
        %526 = vmatprep.subr.mxu0 0.0
        %527 = vmatpush1.msra.mxu0 %v400
        %528 = vmatprep.subr.mxu0 0.0
        %529 = vmatpush1.msra.mxu0 %v399
        %530 = vmatprep.subr.mxu0 0.0
        %531 = vmatpush1.msra.mxu0 %v398
        %532 = vmatprep.subr.mxu0 0.0
        %533 = vmatpush1.msra.mxu0 %v397
        %534 = vmatprep.subr.mxu0 0.0
        %535 = vmatpush1.msra.mxu0 %v396
        %536 = vmatprep.subr.mxu0 0.0
        %537 = vmatpush1.msra.mxu0 %v395
        %538 = vmatprep.subr.mxu0 0.0
        %539 = vmatpush1.msra.mxu0 %v394
        %540 = vmatprep.subr.mxu0 0.0
        %541 = vmatpush1.msra.mxu0 %v393
        %542 = vmatprep.subr.mxu0 0.0
        %543 = vmatpush1.msra.mxu0 %v392
        %544 = vmatprep.subr.mxu0 0.0
        %545 = vmatpush1.msra.mxu0 %v391
        %546 = vmatprep.subr.mxu0 0.0
        %547 = vmatpush1.msra.mxu0 %v390
        %548 = vmatprep.subr.mxu0 0.0
        %549 = vmatpush1.msra.mxu0 %v389
        %550 = vmatprep.subr.mxu0 0.0
        %551 = vmatpush2.msra.mxu0 0.0
        %552 = vmatprep.subr.mxu0 0.0
        %553 = vmatpush2.msra.mxu0 0.0
        %554 = vmatprep.subr.mxu0 0.0
        %555 = vmatpush2.msra.mxu0 0.0
        %556 = vmatprep.subr.mxu0 0.0
        %557 = vmatpush2.msra.mxu0 0.0
        %558 = vmatprep.subr.mxu0 0.0
        %559 = vmatpush2.msra.mxu0 0.0
        %560 = vmatprep.subr.mxu0 0.0
        %561 = vmatpush2.msra.mxu0 0.0
        %562 = vmatprep.subr.mxu0 0.0
        %563 = vmatpush2.msra.mxu0 0.0
        %564 = vmatprep.subr.mxu0 0.0
        %565 = vmatpush2.msra.mxu0 0.0
        %566 = vmatprep.subr.mxu0 0.0
        %567 = vmatpush2.msra.mxu0 0.0
        %568 = vmatprep.subr.mxu0 0.0
        %569 = vmatpush2.msra.mxu0 0.0
        %570 = vmatprep.subr.mxu0 0.0
        %571 = vmatpush2.msra.mxu0 0.0
        %572 = vmatprep.subr.mxu0 0.0
        %573 = vmatpush2.msra.mxu0 0.0
        %574 = vmatprep.subr.mxu0 0.0
        %575 = vmatpush2.msra.mxu0 0.0
        %576 = vmatprep.subr.mxu0 0.0
        %577 = vmatpush2.msra.mxu0 0.0
        %578 = vmatprep.subr.mxu0 0.0
        %579 = vmatpush2.msra.mxu0 0.0
        %580 = vmatprep.subr.mxu0 0.0
        %581 = vmatpush2.msra.mxu0 0.0
        %582 = vmatprep.mubr.f32.mxu0 0.0
        %583 = vmatmul.mubr.f32.gmra.mxu0 %v513
        %v584 = vpop.f32.mrf.mxu0
        %v585 = vadd.f32 0.0, %v584
        %v586 = vpop.f32.mrf.mxu0
        %587 = vmatprep.mubr.f32.mxu0 0.0
        %588 = vmatmul.mubr.f32.gmra.mxu0 %v516
        %v589 = vpop.f32.mrf.mxu0
        %v590 = vadd.f32 0.0, %v589
        %v591 = vpop.f32.mrf.mxu0
        %592 = vdwg.mxu0
        %v594 = vsel %vm511, %v374, 0
        %v597 = vsel %vm511, %v375, 0
        %599 = vmatprep.subr.mxu0 0.0
        %600 = vmatpush1.msra.mxu0 0.0
        %601 = vmatprep.subr.mxu0 0.0
        %602 = vmatpush1.msra.mxu0 0.0
        %603 = vmatprep.subr.mxu0 0.0
        %604 = vmatpush1.msra.mxu0 0.0
        %605 = vmatprep.subr.mxu0 0.0
        %606 = vmatpush1.msra.mxu0 0.0
        %607 = vmatprep.subr.mxu0 0.0
        %608 = vmatpush1.msra.mxu0 %v387
        %609 = vmatprep.subr.mxu0 0.0
        %610 = vmatpush1.msra.mxu0 %v386
        %611 = vmatprep.subr.mxu0 0.0
        %612 = vmatpush1.msra.mxu0 %v385
        %613 = vmatprep.subr.mxu0 0.0
        %614 = vmatpush1.msra.mxu0 %v384
        %615 = vmatprep.subr.mxu0 0.0
        %616 = vmatpush1.msra.mxu0 %v383
        %617 = vmatprep.subr.mxu0 0.0
        %618 = vmatpush1.msra.mxu0 %v382
        %619 = vmatprep.subr.mxu0 0.0
        %620 = vmatpush1.msra.mxu0 %v381
        %621 = vmatprep.subr.mxu0 0.0
        %622 = vmatpush1.msra.mxu0 %v380
        %623 = vmatprep.subr.mxu0 0.0
        %624 = vmatpush1.msra.mxu0 %v379
        %625 = vmatprep.subr.mxu0 0.0
        %626 = vmatpush1.msra.mxu0 %v378
        %627 = vmatprep.subr.mxu0 0.0
        %628 = vmatpush1.msra.mxu0 %v377
        %629 = vmatprep.subr.mxu0 0.0
        %630 = vmatpush1.msra.mxu0 %v376
        %631 = vmatprep.subr.mxu0 0.0
        %632 = vmatpush2.msra.mxu0 0.0
        %633 = vmatprep.subr.mxu0 0.0
        %634 = vmatpush2.msra.mxu0 0.0
        %635 = vmatprep.subr.mxu0 0.0
        %636 = vmatpush2.msra.mxu0 0.0
        %637 = vmatprep.subr.mxu0 0.0
        %638 = vmatpush2.msra.mxu0 0.0
        %639 = vmatprep.subr.mxu0 0.0
        %640 = vmatpush2.msra.mxu0 0.0
        %641 = vmatprep.subr.mxu0 0.0
        %642 = vmatpush2.msra.mxu0 0.0
        %643 = vmatprep.subr.mxu0 0.0
        %644 = vmatpush2.msra.mxu0 0.0
        %645 = vmatprep.subr.mxu0 0.0
        %646 = vmatpush2.msra.mxu0 0.0
        %647 = vmatprep.subr.mxu0 0.0
        %648 = vmatpush2.msra.mxu0 0.0
        %649 = vmatprep.subr.mxu0 0.0
        %650 = vmatpush2.msra.mxu0 0.0
        %651 = vmatprep.subr.mxu0 0.0
        %652 = vmatpush2.msra.mxu0 0.0
        %653 = vmatprep.subr.mxu0 0.0
        %654 = vmatpush2.msra.mxu0 0.0
        %655 = vmatprep.subr.mxu0 0.0
        %656 = vmatpush2.msra.mxu0 0.0
        %657 = vmatprep.subr.mxu0 0.0
        %658 = vmatpush2.msra.mxu0 0.0
        %659 = vmatprep.subr.mxu0 0.0
        %660 = vmatpush2.msra.mxu0 0.0
        %661 = vmatprep.subr.mxu0 0.0
        %662 = vmatpush2.msra.mxu0 0.0
        %663 = vmatprep.mubr.f32.mxu0 0.0
        %664 = vmatmul.mubr.f32.gmra.mxu0 %v594
        %v665 = vpop.f32.mrf.mxu0
        %v666 = vadd.f32 %v585, %v665
        %v667 = vpop.f32.mrf.mxu0
        %668 = vmatprep.mubr.f32.mxu0 0.0
        %669 = vmatmul.mubr.f32.gmra.mxu0 %v597
        %v670 = vpop.f32.mrf.mxu0
        %v671 = vadd.f32 %v590, %v670
        %v672 = vpop.f32.mrf.mxu0
        %673 = vdwg.mxu0
        %674 = vmatprep.subr.mxu0 0.0
        %675 = vmatpush1.msra.mxu0 0.0
        %676 = vmatprep.subr.mxu0 0.0
        %677 = vmatpush1.msra.mxu0 0.0
        %678 = vmatprep.subr.mxu0 0.0
        %679 = vmatpush1.msra.mxu0 0.0
        %680 = vmatprep.subr.mxu0 0.0
        %681 = vmatpush1.msra.mxu0 0.0
        %682 = vmatprep.subr.mxu0 0.0
        %683 = vmatpush1.msra.mxu0 0.0
        %684 = vmatprep.subr.mxu0 0.0
        %685 = vmatpush1.msra.mxu0 0.0
        %686 = vmatprep.subr.mxu0 0.0
        %687 = vmatpush1.msra.mxu0 0.0
        %688 = vmatprep.subr.mxu0 0.0
        %689 = vmatpush1.msra.mxu0 0.0
        %690 = vmatprep.subr.mxu0 0.0
        %691 = vmatpush1.msra.mxu0 0.0
        %692 = vmatprep.subr.mxu0 0.0
        %693 = vmatpush1.msra.mxu0 0.0
        %694 = vmatprep.subr.mxu0 0.0
        %695 = vmatpush1.msra.mxu0 0.0
        %696 = vmatprep.subr.mxu0 0.0
        %697 = vmatpush1.msra.mxu0 0.0
        %698 = vmatprep.subr.mxu0 0.0
        %699 = vmatpush1.msra.mxu0 0.0
        %700 = vmatprep.subr.mxu0 0.0
        %701 = vmatpush1.msra.mxu0 0.0
        %702 = vmatprep.subr.mxu0 0.0
        %703 = vmatpush1.msra.mxu0 %v508
        %704 = vmatprep.subr.mxu0 0.0
        %705 = vmatpush1.msra.mxu0 %v503
        %706 = vmatprep.subr.mxu0 0.0
        %707 = vmatpush2.msra.mxu0 0.0
        %708 = vmatprep.subr.mxu0 0.0
        %709 = vmatpush2.msra.mxu0 0.0
        %710 = vmatprep.subr.mxu0 0.0
        %711 = vmatpush2.msra.mxu0 0.0
        %712 = vmatprep.subr.mxu0 0.0
        %713 = vmatpush2.msra.mxu0 0.0
        %714 = vmatprep.subr.mxu0 0.0
        %715 = vmatpush2.msra.mxu0 0.0
        %716 = vmatprep.subr.mxu0 0.0
        %717 = vmatpush2.msra.mxu0 0.0
        %718 = vmatprep.subr.mxu0 0.0
        %719 = vmatpush2.msra.mxu0 0.0
        %720 = vmatprep.subr.mxu0 0.0
        %721 = vmatpush2.msra.mxu0 0.0
        %722 = vmatprep.subr.mxu0 0.0
        %723 = vmatpush2.msra.mxu0 0.0
        %724 = vmatprep.subr.mxu0 0.0
        %725 = vmatpush2.msra.mxu0 0.0
        %726 = vmatprep.subr.mxu0 0.0
        %727 = vmatpush2.msra.mxu0 0.0
        %728 = vmatprep.subr.mxu0 0.0
        %729 = vmatpush2.msra.mxu0 0.0
        %730 = vmatprep.subr.mxu0 0.0
        %731 = vmatpush2.msra.mxu0 0.0
        %732 = vmatprep.subr.mxu0 0.0
        %733 = vmatpush2.msra.mxu0 0.0
        %734 = vmatprep.subr.mxu0 0.0
        %735 = vmatpush2.msra.mxu0 0.0
        %736 = vmatprep.subr.mxu0 0.0
        %737 = vmatpush2.msra.mxu0 0.0
        %738 = vmatprep.mubr.f32.mxu0 0.0
        %739 = vmatmul.mubr.f32.gmra.mxu0 %v431
        %v740 = vpop.f32.mrf.mxu0
        %v741 = vadd.f32 0.0, %v740
        %v742 = vpop.f32.mrf.mxu0
        %743 = vmatprep.mubr.f32.mxu0 0.0
        %744 = vmatmul.mubr.f32.gmra.mxu0 %v434
        %v745 = vpop.f32.mrf.mxu0
        %v746 = vadd.f32 0.0, %v745
        %v747 = vpop.f32.mrf.mxu0
        %748 = vdwg.mxu0
        %v750 = vsel %vm511, %v741, 0
        %v753 = vsel %vm511, %v746, 0
        %755 = vmatprep.subr.mxu0 0.0
        %756 = vmatpush1.msra.mxu0 0.0
        %757 = vmatprep.subr.mxu0 0.0
        %758 = vmatpush1.msra.mxu0 0.0
        %759 = vmatprep.subr.mxu0 0.0
        %760 = vmatpush1.msra.mxu0 0.0
        %761 = vmatprep.subr.mxu0 0.0
        %762 = vmatpush1.msra.mxu0 0.0
        %763 = vmatprep.subr.mxu0 0.0
        %764 = vmatpush1.msra.mxu0 %v413
        %765 = vmatprep.subr.mxu0 0.0
        %766 = vmatpush1.msra.mxu0 %v412
        %767 = vmatprep.subr.mxu0 0.0
        %768 = vmatpush1.msra.mxu0 %v411
        %769 = vmatprep.subr.mxu0 0.0
        %770 = vmatpush1.msra.mxu0 %v410
        %771 = vmatprep.subr.mxu0 0.0
        %772 = vmatpush1.msra.mxu0 %v409
        %773 = vmatprep.subr.mxu0 0.0
        %774 = vmatpush1.msra.mxu0 %v408
        %775 = vmatprep.subr.mxu0 0.0
        %776 = vmatpush1.msra.mxu0 %v407
        %777 = vmatprep.subr.mxu0 0.0
        %778 = vmatpush1.msra.mxu0 %v406
        %779 = vmatprep.subr.mxu0 0.0
        %780 = vmatpush1.msra.mxu0 %v405
        %781 = vmatprep.subr.mxu0 0.0
        %782 = vmatpush1.msra.mxu0 %v404
        %783 = vmatprep.subr.mxu0 0.0
        %784 = vmatpush1.msra.mxu0 %v403
        %785 = vmatprep.subr.mxu0 0.0
        %786 = vmatpush1.msra.mxu0 %v402
        %787 = vmatprep.subr.mxu0 0.0
        %788 = vmatpush2.msra.mxu0 0.0
        %789 = vmatprep.subr.mxu0 0.0
        %790 = vmatpush2.msra.mxu0 0.0
        %791 = vmatprep.subr.mxu0 0.0
        %792 = vmatpush2.msra.mxu0 0.0
        %793 = vmatprep.subr.mxu0 0.0
        %794 = vmatpush2.msra.mxu0 0.0
        %795 = vmatprep.subr.mxu0 0.0
        %796 = vmatpush2.msra.mxu0 0.0
        %797 = vmatprep.subr.mxu0 0.0
        %798 = vmatpush2.msra.mxu0 0.0
        %799 = vmatprep.subr.mxu0 0.0
        %800 = vmatpush2.msra.mxu0 0.0
        %801 = vmatprep.subr.mxu0 0.0
        %802 = vmatpush2.msra.mxu0 0.0
        %803 = vmatprep.subr.mxu0 0.0
        %804 = vmatpush2.msra.mxu0 0.0
        %805 = vmatprep.subr.mxu0 0.0
        %806 = vmatpush2.msra.mxu0 0.0
        %807 = vmatprep.subr.mxu0 0.0
        %808 = vmatpush2.msra.mxu0 0.0
        %809 = vmatprep.subr.mxu0 0.0
        %810 = vmatpush2.msra.mxu0 0.0
        %811 = vmatprep.subr.mxu0 0.0
        %812 = vmatpush2.msra.mxu0 0.0
        %813 = vmatprep.subr.mxu0 0.0
        %814 = vmatpush2.msra.mxu0 0.0
        %815 = vmatprep.subr.mxu0 0.0
        %816 = vmatpush2.msra.mxu0 0.0
        %817 = vmatprep.subr.mxu0 0.0
        %818 = vmatpush2.msra.mxu0 0.0
        %819 = vmatprep.mubr.f32.mxu0 0.0
        %820 = vmatmul.mubr.f32.gmra.mxu0 %v750
        %v821 = vpop.f32.mrf.mxu0
        %v822 = vadd.f32 0.0, %v821
        %v823 = vpop.f32.mrf.mxu0
        %824 = vmatprep.mubr.f32.mxu0 0.0
        %825 = vmatmul.mubr.f32.gmra.mxu0 %v753
        %v826 = vpop.f32.mrf.mxu0
        %v827 = vadd.f32 0.0, %v826
        %v828 = vpop.f32.mrf.mxu0
        %829 = vdwg.mxu0
        %v830 = vadd.f32 %v666, %v822
        %v831 = vadd.f32 %v671, %v827
        %832 = vmatprep.subr.mxu0 0.0
        %833 = vmatpush1.msra.mxu0 0.0
        %834 = vmatprep.subr.mxu0 0.0
        %835 = vmatpush1.msra.mxu0 0.0
        %836 = vmatprep.subr.mxu0 0.0
        %837 = vmatpush1.msra.mxu0 0.0
        %838 = vmatprep.subr.mxu0 0.0
        %839 = vmatpush1.msra.mxu0 0.0
        %840 = vmatprep.subr.mxu0 0.0
        %841 = vmatpush1.msra.mxu0 0.0
        %842 = vmatprep.subr.mxu0 0.0
        %843 = vmatpush1.msra.mxu0 0.0
        %844 = vmatprep.subr.mxu0 0.0
        %845 = vmatpush1.msra.mxu0 0.0
        %846 = vmatprep.subr.mxu0 0.0
        %847 = vmatpush1.msra.mxu0 0.0
        %848 = vmatprep.subr.mxu0 0.0
        %849 = vmatpush1.msra.mxu0 0.0
        %850 = vmatprep.subr.mxu0 0.0
        %851 = vmatpush1.msra.mxu0 0.0
        %852 = vmatprep.subr.mxu0 0.0
        %853 = vmatpush1.msra.mxu0 0.0
        %854 = vmatprep.subr.mxu0 0.0
        %855 = vmatpush1.msra.mxu0 0.0
        %856 = vmatprep.subr.mxu0 0.0
        %857 = vmatpush1.msra.mxu0 0.0
        %858 = vmatprep.subr.mxu0 0.0
        %859 = vmatpush1.msra.mxu0 0.0
        %860 = vmatprep.subr.mxu0 0.0
        %861 = vmatpush1.msra.mxu0 %v746
        %862 = vmatprep.subr.mxu0 0.0
        %863 = vmatpush1.msra.mxu0 %v741
        %864 = vmatprep.subr.mxu0 0.0
        %865 = vmatpush2.msra.mxu0 0.0
        %866 = vmatprep.subr.mxu0 0.0
        %867 = vmatpush2.msra.mxu0 0.0
        %868 = vmatprep.subr.mxu0 0.0
        %869 = vmatpush2.msra.mxu0 0.0
        %870 = vmatprep.subr.mxu0 0.0
        %871 = vmatpush2.msra.mxu0 0.0
        %872 = vmatprep.subr.mxu0 0.0
        %873 = vmatpush2.msra.mxu0 0.0
        %874 = vmatprep.subr.mxu0 0.0
        %875 = vmatpush2.msra.mxu0 0.0
        %876 = vmatprep.subr.mxu0 0.0
        %877 = vmatpush2.msra.mxu0 0.0
        %878 = vmatprep.subr.mxu0 0.0
        %879 = vmatpush2.msra.mxu0 0.0
        %880 = vmatprep.subr.mxu0 0.0
        %881 = vmatpush2.msra.mxu0 0.0
        %882 = vmatprep.subr.mxu0 0.0
        %883 = vmatpush2.msra.mxu0 0.0
        %884 = vmatprep.subr.mxu0 0.0
        %885 = vmatpush2.msra.mxu0 0.0
        %886 = vmatprep.subr.mxu0 0.0
        %887 = vmatpush2.msra.mxu0 0.0
        %888 = vmatprep.subr.mxu0 0.0
        %889 = vmatpush2.msra.mxu0 0.0
        %890 = vmatprep.subr.mxu0 0.0
        %891 = vmatpush2.msra.mxu0 0.0
        %892 = vmatprep.subr.mxu0 0.0
        %893 = vmatpush2.msra.mxu0 0.0
        %894 = vmatprep.subr.mxu0 0.0
        %895 = vmatpush2.msra.mxu0 0.0
        %896 = vmatprep.mubr.f32.mxu0 0.0
        %897 = vmatmul.mubr.f32.gmra.mxu0 %v431
        %v898 = vpop.f32.mrf.mxu0
        %v899 = vadd.f32 0.0, %v898
        %v900 = vpop.f32.mrf.mxu0
        %901 = vmatprep.mubr.f32.mxu0 0.0
        %902 = vmatmul.mubr.f32.gmra.mxu0 %v434
        %v903 = vpop.f32.mrf.mxu0
        %v904 = vadd.f32 0.0, %v903
        %v905 = vpop.f32.mrf.mxu0
        %906 = vdwg.mxu0
        %v908 = vsel %vm511, %v899, 0
        %v911 = vsel %vm511, %v904, 0
        %913 = vmatprep.subr.mxu0 0.0
        %914 = vmatpush1.msra.mxu0 0.0
        %915 = vmatprep.subr.mxu0 0.0
        %916 = vmatpush1.msra.mxu0 0.0
        %917 = vmatprep.subr.mxu0 0.0
        %918 = vmatpush1.msra.mxu0 0.0
        %919 = vmatprep.subr.mxu0 0.0
        %920 = vmatpush1.msra.mxu0 0.0
        %921 = vmatprep.subr.mxu0 0.0
        %922 = vmatpush1.msra.mxu0 %v426
        %923 = vmatprep.subr.mxu0 0.0
        %924 = vmatpush1.msra.mxu0 %v425
        %925 = vmatprep.subr.mxu0 0.0
        %926 = vmatpush1.msra.mxu0 %v424
        %927 = vmatprep.subr.mxu0 0.0
        %928 = vmatpush1.msra.mxu0 %v423
        %929 = vmatprep.subr.mxu0 0.0
        %930 = vmatpush1.msra.mxu0 %v422
        %931 = vmatprep.subr.mxu0 0.0
        %932 = vmatpush1.msra.mxu0 %v421
        %933 = vmatprep.subr.mxu0 0.0
        %934 = vmatpush1.msra.mxu0 %v420
        %935 = vmatprep.subr.mxu0 0.0
        %936 = vmatpush1.msra.mxu0 %v419
        %937 = vmatprep.subr.mxu0 0.0
        %938 = vmatpush1.msra.mxu0 %v418
        %939 = vmatprep.subr.mxu0 0.0
        %940 = vmatpush1.msra.mxu0 %v417
        %941 = vmatprep.subr.mxu0 0.0
        %942 = vmatpush1.msra.mxu0 %v416
        %943 = vmatprep.subr.mxu0 0.0
        %944 = vmatpush1.msra.mxu0 %v415
        %945 = vmatprep.subr.mxu0 0.0
        %946 = vmatpush2.msra.mxu0 0.0
        %947 = vmatprep.subr.mxu0 0.0
        %948 = vmatpush2.msra.mxu0 0.0
        %949 = vmatprep.subr.mxu0 0.0
        %950 = vmatpush2.msra.mxu0 0.0
        %951 = vmatprep.subr.mxu0 0.0
        %952 = vmatpush2.msra.mxu0 0.0
        %953 = vmatprep.subr.mxu0 0.0
        %954 = vmatpush2.msra.mxu0 0.0
        %955 = vmatprep.subr.mxu0 0.0
        %956 = vmatpush2.msra.mxu0 0.0
        %957 = vmatprep.subr.mxu0 0.0
        %958 = vmatpush2.msra.mxu0 0.0
        %959 = vmatprep.subr.mxu0 0.0
        %960 = vmatpush2.msra.mxu0 0.0
        %961 = vmatprep.subr.mxu0 0.0
        %962 = vmatpush2.msra.mxu0 0.0
        %963 = vmatprep.subr.mxu0 0.0
        %964 = vmatpush2.msra.mxu0 0.0
        %965 = vmatprep.subr.mxu0 0.0
        %966 = vmatpush2.msra.mxu0 0.0
        %967 = vmatprep.subr.mxu0 0.0
        %968 = vmatpush2.msra.mxu0 0.0
        %969 = vmatprep.subr.mxu0 0.0
        %970 = vmatpush2.msra.mxu0 0.0
        %971 = vmatprep.subr.mxu0 0.0
        %972 = vmatpush2.msra.mxu0 0.0
        %973 = vmatprep.subr.mxu0 0.0
        %974 = vmatpush2.msra.mxu0 0.0
        %975 = vmatprep.subr.mxu0 0.0
        %976 = vmatpush2.msra.mxu0 0.0
        %977 = vmatprep.mubr.f32.mxu0 0.0
        %978 = vmatmul.mubr.f32.gmra.mxu0 %v908
        %v979 = vpop.f32.mrf.mxu0
        %v980 = vadd.f32 0.0, %v979
        %v981 = vpop.f32.mrf.mxu0
        %982 = vmatprep.mubr.f32.mxu0 0.0
        %983 = vmatmul.mubr.f32.gmra.mxu0 %v911
        %v984 = vpop.f32.mrf.mxu0
        %v985 = vadd.f32 0.0, %v984
        %v986 = vpop.f32.mrf.mxu0
        %987 = vdwg.mxu0
        %v988 = vadd.f32 %v830, %v980
        %v989 = vadd.f32 %v831, %v985
        %v990 = vmax.f32 %v988, 0.0
        %v991 = vmax.f32 %v989, 0.0
        %992 = vst [vmem:[%s247] sm:$0xff] %v990
        %993 = vst [vmem:[%s247 + $0x8] sm:$0xff] %v991
        %s994 = sand.u32 %s143, 1
        %s995 = scalar_lea.sflag [#allocation4], %s994
        %s996 = sand.u32 %s143, 1
        %s997 = smul.addr %s996, 16
        %s998 = scalar_lea.vmem [#allocation5], %s997
        // Predicated region
        $region45: #{tpu_custom_call.1} parent=39 // pred_check
          %p999 = pneg %p153
        $region46: #{tpu_custom_call.1} parent=39 // pred_check_branch
          %1001 = sbr.rel (%p999) target = $region48
        $region47: #{tpu_custom_call.1} parent=39 // pred_region
          %s1003 = ssub.s32 256, 256
          %1004 = vsyncadd %s995, %s1003
          %s1005 = smul.addr %s20, 2
          %s1006 = smul.addr %s1005, 128
          %s1007 = scalar_lea.hbm %s5, %s1006
          %s1008 = sshll.u32 %s998, 4
          %s1009 = int_to_ptr.vmem [resolvable:$true] %s1008
          %1014 = dma.vmem_to_hbm [thread:$0]  %s1009, 256, %s1007, %s995, 128, 128, 8
        $region48: #{tpu_custom_call.1} parent=39 // pred_fallthru
          _
      $region40: #{tpu_custom_call.1} parent=5 // pred_fallthru
        _
      %p1015 = scmp.le.s32.totalorder 2, %s15
      // Predicated region
      $region49: #{tpu_custom_call.1} parent=5 // pred_check
        %p1016 = pneg %p1015
      $region50: #{tpu_custom_call.1} parent=5 // pred_check_branch
        %1018 = sbr.rel (%p1016) target = $region52
      $region51: #{tpu_custom_call.1} parent=5 // pred_region
        %s1019 = ssub.s32 %s15, 2
        // Predicated region
        $region53: #{tpu_custom_call.1} parent=51 // pred_check
          %p1020 = pneg %p159
        $region54: #{tpu_custom_call.1} parent=51 // pred_check_branch
          %1022 = sbr.rel (%p1020) target = $region56
        $region55: #{tpu_custom_call.1} parent=51 // pred_region
          %s1023 = sand.u32 %s144, 1
          %s1024 = scalar_lea.sflag [#allocation4], %s1023
          %s1025 = sand.u32 %s144, 1
          %s1026 = smul.addr %s1025, 16
          %s1027 = scalar_lea.vmem [#allocation5], %s1026
          %1028 = dma.done %s1024, 256
        $region56: #{tpu_custom_call.1} parent=51 // pred_fallthru
          _
      $region52: #{tpu_custom_call.1} parent=5 // pred_fallthru
        _
    $region6: #{tpu_custom_call.1} parent=1 // loop_footer
      %s19 = sadd.s32 1, %s15
    $region7: #{tpu_custom_call.1} parent=1 // loop_footer_branch
      %14 = sbr.rel target = $region3
    $region8: #{tpu_custom_call.1} parent=1 // loop_exit
      _
    %1029 = vsyncpa [#allocation3], 1
    %s1030 = scalar_lea.sflag [#allocation3], 1
    %1031 = vsyncpa %s1030, 1
    %1032 = vsyncpa [#allocation4], 1
    %s1033 = scalar_lea.sflag [#allocation4], 1
    %1034 = vsyncpa %s1033, 1

</llo_original>
